<compile_context>
chip_gen: v5e
topology: v5e:2x2
jax: 0.10.0
libtpu: 0.0.40
codegen_flags: <defaults>
</compile_context>

<pallas_src>
import functools

import jax
import jax.numpy as jnp
from jax.experimental import pallas as pl
from jax.experimental.pallas import tpu as pltpu


# --------------------------------------------------------------------------------------
# VMEM budgeting (generation-portable: v5e/v6e 128 MiB, v7x 64 MiB)
# --------------------------------------------------------------------------------------
def _vmem_capacity_bytes():
    try:
        info = pltpu.get_tpu_info()
        for attr in ("vmem_capacity_bytes", "vmem_bytes", "vmem_size_bytes"):
            v = getattr(info, attr, None)
            if v:
                return int(v)
    except Exception:
        pass
    return 64 << 20  # conservative fallback == v7x physical VMEM


def _vmem_limit_bytes(cap):
    # v5e/v6e (128 MiB physical): ~100 MiB scoped; v7x (64 MiB): ~57 MiB scoped.
    return max(32 << 20, min(int(0.9 * cap), 100 << 20))


def _choose_seq_tile(S, B, H, budget_bytes):
    """Largest seq tile whose double-buffered f32 input block fits the budget."""
    max_ts = max(8, budget_bytes // (8 * B * H))  # 2 bufs * B*ts*H * 4 bytes <= budget
    if S <= max_ts:
        return S
    ts = (max_ts // 8) * 8
    # prefer a nearby divisor of S (avoids the masked tail) without shrinking too far
    for cand in range(ts, 7, -8):
        if S % cand == 0:
            return cand
        if ts - cand > 256:
            break
    return ts


def _choose_l_tile(L, V, B, H, budget_bytes):
    """Largest positions-per-tile whose kernel-2 VMEM residency fits the budget.

    Residency = double-buffered {w3 tile (bf16), b3 tile, logits tile (f32), tokens}
    + fixed (pooled, w1, w2, biases, h2 scratch).  lt*V is kept a multiple of 128 so
    the logits store stays lane-dense / unmasked.
    """
    fixed = (2 * B * H * 4                       # pooled, double-buffered
             + 2 * (H * 512 + 512 * 256) * 2     # w1 + w2 (bf16), double-buffered
             + 2 * (512 + 256) * 4               # b1 + b2
             + B * 256 * 2)                      # h2 scratch (bf16)
    best = None
    for lt in range(1, L + 1):
        if L % lt:
            continue
        if (lt * V) % 128 and lt != L:
            continue  # keep w3 / logits blocks lane-aligned
        F = lt * V
        var = 2 * (256 * F * 2 + F * 4 + B * F * 4 + B * lt * 4)
        if fixed + var <= budget_bytes:
            best = lt
        elif best is None:
            best = lt  # smallest legal tile even if over budget
    return best if best is not None else L


# --------------------------------------------------------------------------------------
# Kernel 1: tiled mean-pool over seq (masked tail) + length predictor MLP
# --------------------------------------------------------------------------------------
def _pool_length_kernel(x_ref, w1_ref, b1_ref, w2_ref, b2_ref,
                        pooled_ref, ratio_ref, acc_ref, *, seq_len, seq_tile):
    s = pl.program_id(0)

    @pl.when(s == 0)
    def _():
        acc_ref[...] = jnp.zeros_like(acc_ref)

    x = x_ref[...]                                                   # (B, ts, H)
    if seq_len % seq_tile:                                           # static: masked tail
        pos = s * seq_tile + jax.lax.broadcasted_iota(jnp.int32, (1, seq_tile, 1), 1)
        x = jnp.where(pos < seq_len, x, 0.0)
    acc_ref[...] += jnp.sum(x, axis=1)                               # (B, H)

    @pl.when(s == pl.num_programs(0) - 1)
    def _():
        pooled = acc_ref[...] * (1.0 / seq_len)                      # mean over full S
        pooled_ref[...] = pooled
        h = jnp.dot(pooled, w1_ref[...],
                    preferred_element_type=jnp.float32) + b1_ref[...]
        h = jnp.maximum(h, 0.0)                                      # ReLU
        r = jnp.dot(h, w2_ref[...],
                    preferred_element_type=jnp.float32) + b2_ref[...]
        ratio_ref[...] = jax.nn.sigmoid(r)                           # (B, 1)


# --------------------------------------------------------------------------------------
# Kernel 2: fused per-codebook projector MLP + argmax (single slab matmul per tile)
# --------------------------------------------------------------------------------------
def _codebook_mlp_argmax_kernel(pooled_ref, w1_ref, b1_ref, w2_ref, b2_ref,
                                w3_ref, b3_ref, logits_ref, tokens_ref,
                                h2_ref, *, l_tile, vocab):
    n = pl.program_id(1)

    # h1/h2 only once per codebook (position axis is sequential / "arbitrary").
    @pl.when(n == 0)
    def _():
        p = pooled_ref[...].astype(jnp.bfloat16)                     # (B, H)
        h1 = jnp.dot(p, w1_ref[0],
                     preferred_element_type=jnp.float32) + b1_ref[0]
        h1 = jnp.maximum(h1, 0.0)
        # TODO(synk): nn.Dropout(0.1) is identity at inference time; not modeled here.
        h2 = jnp.dot(h1.astype(jnp.bfloat16), w2_ref[0],
                     preferred_element_type=jnp.float32) + b2_ref[0]
        h2_ref[...] = jnp.maximum(h2, 0.0).astype(jnp.bfloat16)      # (B, 256)

    # One fused lane-dense matmul: (B, 256) @ (256, lt*V)  ->  (B, lt*V) slab.
    lg = jnp.dot(h2_ref[...], w3_ref[0],
                 preferred_element_type=jnp.float32) + b3_ref[0]
    logits_ref[0, 0] = lg                                            # unmasked lane-dense vst

    # Argmax over vocab on the minor-split view; first-max tie-break == torch.argmax.
    b = lg.shape[0]
    lg3 = lg.reshape(b, l_tile, vocab)                               # (B, lt, V)
    m = jnp.max(lg3, axis=-1, keepdims=True)
    idx = jax.lax.broadcasted_iota(jnp.int32, lg3.shape, 2)
    cand = jnp.where(lg3 == m, idx, vocab)
    tokens_ref[0, 0] = jnp.min(cand, axis=-1).astype(jnp.int32)      # (B, lt)


# --------------------------------------------------------------------------------------
# Parameters
# --------------------------------------------------------------------------------------
def init_params(key, hidden_size, num_codebooks, max_length, vocab_size):
    keys = jax.random.split(key, 5)
    s = 0.05
    H, C, L, V = hidden_size, num_codebooks, max_length, vocab_size
    return {
        # length predictor stays f32 (tiny; keeps predicted_length rounding faithful)
        "lp_w1": jax.random.normal(keys[0], (H, 128), jnp.float32) * s,
        "lp_b1": jnp.zeros((1, 128), jnp.float32),
        "lp_w2": jax.random.normal(keys[1], (128, 1), jnp.float32) * s,
        "lp_b2": jnp.zeros((1, 1), jnp.float32),
        # projector weights stored bf16 -> halves the dominant HBM stream; biases f32
        # TODO(synk): bf16 storage can flip argmax on exact ties vs the f32 torch module.
        "w1s": (jax.random.normal(keys[2], (C, H, 512), jnp.float32) * s).astype(jnp.bfloat16),
        "b1s": jnp.zeros((C, 1, 512), jnp.float32),
        "w2s": (jax.random.normal(keys[3], (C, 512, 256), jnp.float32) * s).astype(jnp.bfloat16),
        "b2s": jnp.zeros((C, 1, 256), jnp.float32),
        # final projection pre-reshaped for a single fused matmul per tile:
        # (C, 256, L*V)  (== torch Linear(256, L*V).weight.T, done once at load time)
        "w3s": (jax.random.normal(keys[4], (C, 256, L * V), jnp.float32) * s).astype(jnp.bfloat16),
        "b3s": jnp.zeros((C, 1, L * V), jnp.float32),
    }


# --------------------------------------------------------------------------------------
# Forward
# --------------------------------------------------------------------------------------
def decoder_forward(params, encoder_hidden_states, encoder_attention_mask=None,
                    max_new_tokens=None, *, max_length, vocab_size,
                    l_tile=None, seq_tile=None):
    # encoder_attention_mask is accepted but unused, matching the PyTorch forward.
    x = encoder_hidden_states
    B, S, H = x.shape
    C = params["w1s"].shape[0]
    L, V = max_length, vocab_size
    if max_new_tokens is None:
        max_new_tokens = max_length
    actual_length = min(max_new_tokens, max_length)
    # Like the PyTorch .view(B, actual_length, vocab), only valid when numel matches.
    assert actual_length == max_length

    vmem_cap = _vmem_capacity_bytes()
    vmem_limit = _vmem_limit_bytes(vmem_cap)

    # ---------------- kernel 1: seq-tiled mean pool + length predictor ----------------
    ts = seq_tile if seq_tile is not None else _choose_seq_tile(
        S, B, H, budget_bytes=int(0.4 * vmem_cap))
    ts = min(ts, S)
    assert ts == S or ts % 8 == 0
    ns = pl.cdiv(S, ts)

    pool_kernel = functools.partial(_pool_length_kernel, seq_len=S, seq_tile=ts)
    pooled, ratio = pl.pallas_call(
        pool_kernel,
        out_shape=(jax.ShapeDtypeStruct((B, H), jnp.float32),
                   jax.ShapeDtypeStruct((B, 1), jnp.float32)),
        grid_spec=pltpu.PrefetchScalarGridSpec(
            num_scalar_prefetch=0,
            grid=(ns,),
            in_specs=[
                pl.BlockSpec((B, ts, H), lambda s: (0, s, 0)),
                pl.BlockSpec((H, 128), lambda s: (0, 0)),
                pl.BlockSpec((1, 128), lambda s: (0, 0)),
                pl.BlockSpec((128, 1), lambda s: (0, 0)),
                pl.BlockSpec((1, 1), lambda s: (0, 0)),
            ],
            out_specs=[
                pl.BlockSpec((B, H), lambda s: (0, 0)),
                pl.BlockSpec((B, 1), lambda s: (0, 0)),
            ],
            scratch_shapes=[pltpu.VMEM((B, H), jnp.float32)],
        ),
        compiler_params=pltpu.CompilerParams(
            dimension_semantics=("arbitrary",),
            vmem_limit_bytes=vmem_limit),
    )(x, params["lp_w1"], params["lp_b1"], params["lp_w2"], params["lp_b2"])

    # ---------------- kernel 2: fused per-codebook MLP + argmax ----------------
    lt = l_tile if l_tile is not None else _choose_l_tile(
        L, V, B, H, budget_bytes=int(0.55 * vmem_cap))
    assert L % lt == 0
    assert (lt * V) % 128 == 0 or lt == L
    nt = L // lt
    F = lt * V

    flops = 2 * C * B * (H * 512 + 512 * 256 + 256 * L * V)
    bytes_accessed = (
        2 * (params["w1s"].size + params["w2s"].size + params["w3s"].size)   # bf16 weights
        + 4 * (params["b1s"].size + params["b2s"].size + params["b3s"].size)
        + 4 * B * H + 4 * C * L * B * V + 4 * C * L * B)
    cost = pl.CostEstimate(flops=flops, transcendentals=0,
                           bytes_accessed=bytes_accessed)

    cb_kernel = functools.partial(_codebook_mlp_argmax_kernel, l_tile=lt, vocab=V)
    logits_cnbf, tokens_cnbl = pl.pallas_call(
        cb_kernel,
        out_shape=(jax.ShapeDtypeStruct((C, nt, B, F), jnp.float32),
                   jax.ShapeDtypeStruct((C, nt, B, lt), jnp.int32)),
        grid_spec=pltpu.PrefetchScalarGridSpec(
            num_scalar_prefetch=0,
            grid=(C, nt),
            in_specs=[
                pl.BlockSpec((B, H), lambda c, n: (0, 0)),
                pl.BlockSpec((1, H, 512), lambda c, n: (c, 0, 0)),
                pl.BlockSpec((1, 1, 512), lambda c, n: (c, 0, 0)),
                pl.BlockSpec((1, 512, 256), lambda c, n: (c, 0, 0)),
                pl.BlockSpec((1, 1, 256), lambda c, n: (c, 0, 0)),
                pl.BlockSpec((1, 256, F), lambda c, n: (c, 0, n)),
                pl.BlockSpec((1, 1, F), lambda c, n: (c, 0, n)),
            ],
            out_specs=[
                pl.BlockSpec((1, 1, B, F), lambda c, n: (c, n, 0, 0)),
                pl.BlockSpec((1, 1, B, lt), lambda c, n: (c, n, 0, 0)),
            ],
            scratch_shapes=[pltpu.VMEM((B, 256), jnp.bfloat16)],
        ),
        compiler_params=pltpu.CompilerParams(
            dimension_semantics=("parallel", "arbitrary"),
            vmem_limit_bytes=vmem_limit),
        cost_estimate=cost,
    )(pooled, params["w1s"], params["b1s"], params["w2s"], params["b2s"],
      params["w3s"], params["b3s"])

    # ---------------- glue: final torch-style layouts (small, B-scaled => cheap) ------
    logits_bclv = jnp.transpose(
        logits_cnbf.reshape(C, nt, B, lt, V), (2, 0, 1, 3, 4)).reshape(B, C, L, V)
    tokens_bcl = jnp.transpose(tokens_cnbl, (2, 0, 1, 3)).reshape(B, C, L)
    sequences = tokens_bcl.reshape(B * C, L)                              # (B*C, L)
    predicted_length = jnp.round(ratio * actual_length).astype(jnp.int32)  # (B, 1)

    return {
        "sequences": sequences,
        "predicted_length": predicted_length,
        "logits": logits_bclv,
        "tokens": tokens_bcl,
        "actual_length": actual_length,
    }


# --------------------------------------------------------------------------------------
# Pure-JAX reference (mirrors the kernel's bf16-weight numerics) for validation
# --------------------------------------------------------------------------------------
def _reference_forward(params, x, L, V):
    C = params["w1s"].shape[0]
    pooled = x.mean(axis=1)
    h = jnp.maximum(pooled @ params["lp_w1"] + params["lp_b1"], 0.0)
    ratio = jax.nn.sigmoid(h @ params["lp_w2"] + params["lp_b2"])
    p16 = pooled.astype(jnp.bfloat16)
    logits = []
    for c in range(C):
        h1 = jnp.maximum(
            jnp.dot(p16, params["w1s"][c], preferred_element_type=jnp.float32)
            + params["b1s"][c], 0.0)
        h2 = jnp.maximum(
            jnp.dot(h1.astype(jnp.bfloat16), params["w2s"][c],
                    preferred_element_type=jnp.float32) + params["b2s"][c], 0.0)
        lg = jnp.dot(h2.astype(jnp.bfloat16), params["w3s"][c],
                     preferred_element_type=jnp.float32) + params["b3s"][c]
        logits.append(lg.reshape(-1, L, V))
    logits = jnp.stack(logits, axis=1)                                # (B, C, L, V)
    tokens = jnp.argmax(logits, axis=-1).astype(jnp.int32)            # (B, C, L)
    return ratio, logits, tokens


if __name__ == "__main__":
    # small but representative shapes (S chosen non-divisible to exercise masked tail)
    B, S, H = 2, 20, 32          # batch, encoder seq, hidden
    C, L, V = 2, 16, 64          # num_codebooks, max_length, vocab_size

    key = jax.random.PRNGKey(0)
    kx, kp = jax.random.split(key)
    params = init_params(kp, H, C, L, V)

    encoder_hidden_states = jax.random.normal(kx, (B, S, H), jnp.float32)
    encoder_attention_mask = jnp.ones((B, S), jnp.int32)

    # small tiles chosen explicitly so multi-tile (position / seq + tail) paths run
    out = decoder_forward(params, encoder_hidden_states, encoder_attention_mask,
                          max_length=L, vocab_size=V, l_tile=4, seq_tile=8)

    jax.block_until_ready((out["sequences"], out["predicted_length"],
                           out["logits"], out["tokens"]))

    assert out["sequences"].shape == (B * C, L)
    assert out["predicted_length"].shape == (B, 1)
    assert out["logits"].shape == (B, C, L, V)
    assert out["tokens"].shape == (B, C, L)
    assert out["actual_length"] == L

    # numerical validation against a pure-JAX reference with identical bf16 weights
    ratio_ref, logits_ref_, _ = _reference_forward(params, encoder_hidden_states, L, V)
    pred_len_ref = jnp.round(ratio_ref * L).astype(jnp.int32)
    assert bool(jnp.allclose(out["logits"], logits_ref_, atol=5e-4, rtol=1e-3))
    assert bool(jnp.all(out["predicted_length"] == pred_len_ref))
    # fused in-kernel argmax must agree exactly with argmax of the kernel's own logits
    assert bool(jnp.all(out["tokens"] ==
                        jnp.argmax(out["logits"], axis=-1).astype(jnp.int32)))

    print("KERNEL_OK")
</pallas_src>

<mosaic_0001>
module attributes {stable_mosaic.version = 11 : i64} {
  func.func @_pool_length_kernel(%arg0: i32, %arg1: memref<2x8x32xf32, #tpu.memory_space<vmem>>, %arg2: memref<32x128xf32, #tpu.memory_space<vmem>>, %arg3: memref<1x128xf32, #tpu.memory_space<vmem>>, %arg4: memref<128x1xf32, #tpu.memory_space<vmem>>, %arg5: memref<1x1xf32, #tpu.memory_space<vmem>>, %arg6: memref<2x32xf32, #tpu.memory_space<vmem>>, %arg7: memref<2x1xf32, #tpu.memory_space<vmem>>, %arg8: memref<2x32xf32, #tpu.memory_space<vmem>>) attributes {dimension_semantics = [#tpu.dimension_semantics<arbitrary>], iteration_bounds = array<i64: 3>, scalar_prefetch = 0 : i64, scratch_operands = 1 : i64, tpu.core_type = #tpu.core_type<tc>, window_params = [{transform_indices = @transform_0, window_bounds = array<i64: 2, 8, 32>}, {pipeline_mode = #tpu.pipeline_mode<synchronous>, transform_indices = @transform_1, window_bounds = array<i64: 32, 128>}, {pipeline_mode = #tpu.pipeline_mode<synchronous>, transform_indices = @transform_2, window_bounds = array<i64: 1, 128>}, {pipeline_mode = #tpu.pipeline_mode<synchronous>, transform_indices = @transform_3, window_bounds = array<i64: 128, 1>}, {pipeline_mode = #tpu.pipeline_mode<synchronous>, transform_indices = @transform_4, window_bounds = array<i64: 1, 1>}, {pipeline_mode = #tpu.pipeline_mode<synchronous>, transform_indices = @transform_5, window_bounds = array<i64: 2, 32>}, {pipeline_mode = #tpu.pipeline_mode<synchronous>, transform_indices = @transform_6, window_bounds = array<i64: 2, 1>}]} {
    %c0_i32 = arith.constant 0 : i32
    %0 = arith.cmpi eq, %arg0, %c0_i32 : i32
    %1 = arith.extui %0 : i1 to i32
    %c0_i32_0 = arith.constant 0 : i32
    %2 = arith.cmpi ne, %1, %c0_i32_0 : i32
    scf.if %2 {
      %cst_9 = arith.constant 0.000000e+00 : f32
      %21 = vector.broadcast %cst_9 : f32 to vector<2x32xf32>
      %c0_10 = arith.constant 0 : index
      %c0_11 = arith.constant 0 : index
      %22 = vector.load %arg8[%c0_10, %c0_11] : memref<2x32xf32, #tpu.memory_space<vmem>>, vector<2x32xf32>
      tpu.vector_store %arg8[%c0_10, %c0_11], %21 {strides = array<i32>} : memref<2x32xf32, #tpu.memory_space<vmem>>, vector<2x32xf32>,
    } else {
    }
    %c0 = arith.constant 0 : index
    %c0_1 = arith.constant 0 : index
    %c0_2 = arith.constant 0 : index
    %3 = vector.load %arg1[%c0, %c0_1, %c0_2] : memref<2x8x32xf32, #tpu.memory_space<vmem>>, vector<2x8x32xf32>
    %c8_i32 = arith.constant 8 : i32
    %4 = arith.muli %arg0, %c8_i32 : i32
    %5 = tpu.iota {dimensions = array<i32: 1>} : vector<1x8x1xi32>
    %6 = vector.broadcast %4 : i32 to vector<1x8x1xi32>
    %7 = arith.addi %6, %5 : vector<1x8x1xi32>
    %c20_i32 = arith.constant 20 : i32
    %8 = vector.broadcast %c20_i32 : i32 to vector<1x8x1xi32>
    %9 = arith.cmpi slt, %7, %8 : vector<1x8x1xi32>
    %cst = arith.constant 0.000000e+00 : f32
    %10 = vector.shape_cast %9 : vector<1x8x1xi1> to vector<1x8x1xi1>
    %11 = vector.broadcast %10 : vector<1x8x1xi1> to vector<2x8x32xi1>
    %12 = vector.broadcast %cst : f32 to vector<2x8x32xf32>
    %13 = arith.select %11, %3, %12 : vector<2x8x32xi1>, vector<2x8x32xf32>
    %c0_3 = arith.constant 0 : index
    %c0_4 = arith.constant 0 : index
    %14 = vector.load %arg8[%c0_3, %c0_4] : memref<2x32xf32, #tpu.memory_space<vmem>>, vector<2x32xf32>
    %cst_5 = arith.constant dense<0.000000e+00> : vector<2x32xf32>
    %15 = vector.multi_reduction <add>, %13, %cst_5 [1] : vector<2x8x32xf32> to vector<2x32xf32>
    %16 = arith.addf %14, %15 : vector<2x32xf32>
    %c0_6 = arith.constant 0 : index
    %c0_7 = arith.constant 0 : index
    %17 = vector.load %arg8[%c0_6, %c0_7] : memref<2x32xf32, #tpu.memory_space<vmem>>, vector<2x32xf32>
    tpu.vector_store %arg8[%c0_6, %c0_7], %16 {strides = array<i32>} : memref<2x32xf32, #tpu.memory_space<vmem>>, vector<2x32xf32>,
    %c2_i32 = arith.constant 2 : i32
    %18 = arith.cmpi eq, %arg0, %c2_i32 : i32
    %19 = arith.extui %18 : i1 to i32
    %c0_i32_8 = arith.constant 0 : i32
    %20 = arith.cmpi ne, %19, %c0_i32_8 : i32
    scf.if %20 {
      %c0_9 = arith.constant 0 : index
      %c0_10 = arith.constant 0 : index
      %21 = vector.load %arg8[%c0_9, %c0_10] : memref<2x32xf32, #tpu.memory_space<vmem>>, vector<2x32xf32>
      %cst_11 = arith.constant 5.000000e-02 : f32
      %22 = vector.broadcast %cst_11 : f32 to vector<2x32xf32>
      %23 = arith.mulf %21, %22 : vector<2x32xf32>
      %c0_12 = arith.constant 0 : index
      %c0_13 = arith.constant 0 : index
      %24 = vector.load %arg6[%c0_12, %c0_13] : memref<2x32xf32, #tpu.memory_space<vmem>>, vector<2x32xf32>
      tpu.vector_store %arg6[%c0_12, %c0_13], %23 {strides = array<i32>} : memref<2x32xf32, #tpu.memory_space<vmem>>, vector<2x32xf32>,
      %c0_14 = arith.constant 0 : index
      %c0_15 = arith.constant 0 : index
      %25 = vector.load %arg2[%c0_14, %c0_15] : memref<32x128xf32, #tpu.memory_space<vmem>>, vector<32x128xf32>
      %cst_16 = arith.constant dense<0.000000e+00> : vector<2x128xf32>
      %26 = tpu.matmul %23, %25, %cst_16 {dimension_numbers = #tpu.dot_dimension_numbers<[1], [0], [0], [1], [0, 0, 1, 1], [], []>} : vector<2x32xf32>, vector<32x128xf32>, vector<2x128xf32> -> vector<2x128xf32>
      %c0_17 = arith.constant 0 : index
      %c0_18 = arith.constant 0 : index
      %27 = vector.load %arg3[%c0_17, %c0_18] : memref<1x128xf32, #tpu.memory_space<vmem>>, vector<1x128xf32>
      %28 = vector.broadcast %27 : vector<1x128xf32> to vector<2x128xf32>
      %29 = arith.addf %26, %28 : vector<2x128xf32>
      %cst_19 = arith.constant 0.000000e+00 : f32
      %30 = vector.broadcast %cst_19 : f32 to vector<2x128xf32>
      %31 = arith.maximumf %29, %30 : vector<2x128xf32>
      %c0_20 = arith.constant 0 : index
      %c0_21 = arith.constant 0 : index
      %32 = vector.load %arg4[%c0_20, %c0_21] : memref<128x1xf32, #tpu.memory_space<vmem>>, vector<128x1xf32>
      %cst_22 = arith.constant dense<0.000000e+00> : vector<2x1xf32>
      %33 = tpu.matmul %31, %32, %cst_22 {dimension_numbers = #tpu.dot_dimension_numbers<[1], [0], [0], [1], [0, 0, 1, 1], [], []>} : vector<2x128xf32>, vector<128x1xf32>, vector<2x1xf32> -> vector<2x1xf32>
      %c0_23 = arith.constant 0 : index
      %c0_24 = arith.constant 0 : index
      %34 = vector.load %arg5[%c0_23, %c0_24] : memref<1x1xf32, #tpu.memory_space<vmem>>, vector<1x1xf32>
      %35 = vector.broadcast %34 : vector<1x1xf32> to vector<2x1xf32>
      %36 = arith.addf %33, %35 : vector<2x1xf32>
      %37 = arith.negf %36 : vector<2x1xf32>
      %38 = math.exp %37 : vector<2x1xf32>
      %cst_25 = arith.constant 1.000000e+00 : f32
      %39 = vector.broadcast %cst_25 : f32 to vector<2x1xf32>
      %40 = arith.addf %39, %38 : vector<2x1xf32>
      %41 = arith.divf %39, %40 : vector<2x1xf32>
      %c0_26 = arith.constant 0 : index
      %c0_27 = arith.constant 0 : index
      %42 = vector.load %arg7[%c0_26, %c0_27] : memref<2x1xf32, #tpu.memory_space<vmem>>, vector<2x1xf32>
      tpu.vector_store %arg7[%c0_26, %c0_27], %41 {strides = array<i32>} : memref<2x1xf32, #tpu.memory_space<vmem>>, vector<2x1xf32>,
    } else {
    }
    return
  }
  func.func @transform_0(%arg0: i32) -> (i32, i32, i32) {
    %c0_i32 = arith.constant 0 : i32
    %c0_i32_0 = arith.constant 0 : i32
    %c0_i32_1 = arith.constant 0 : i32
    return %c0_i32, %arg0, %c0_i32_0 : i32, i32, i32
  }
  func.func @transform_1(%arg0: i32) -> (i32, i32) {
    %c0_i32 = arith.constant 0 : i32
    %c0_i32_0 = arith.constant 0 : i32
    %c0_i32_1 = arith.constant 0 : i32
    return %c0_i32, %c0_i32_0 : i32, i32
  }
  func.func @transform_2(%arg0: i32) -> (i32, i32) {
    %c0_i32 = arith.constant 0 : i32
    %c0_i32_0 = arith.constant 0 : i32
    %c0_i32_1 = arith.constant 0 : i32
    return %c0_i32, %c0_i32_0 : i32, i32
  }
  func.func @transform_3(%arg0: i32) -> (i32, i32) {
    %c0_i32 = arith.constant 0 : i32
    %c0_i32_0 = arith.constant 0 : i32
    %c0_i32_1 = arith.constant 0 : i32
    return %c0_i32, %c0_i32_0 : i32, i32
  }
  func.func @transform_4(%arg0: i32) -> (i32, i32) {
    %c0_i32 = arith.constant 0 : i32
    %c0_i32_0 = arith.constant 0 : i32
    %c0_i32_1 = arith.constant 0 : i32
    return %c0_i32, %c0_i32_0 : i32, i32
  }
  func.func @transform_5(%arg0: i32) -> (i32, i32) {
    %c0_i32 = arith.constant 0 : i32
    %c0_i32_0 = arith.constant 0 : i32
    %c0_i32_1 = arith.constant 0 : i32
    return %c0_i32, %c0_i32_0 : i32, i32
  }
  func.func @transform_6(%arg0: i32) -> (i32, i32) {
    %c0_i32 = arith.constant 0 : i32
    %c0_i32_0 = arith.constant 0 : i32
    %c0_i32_1 = arith.constant 0 : i32
    return %c0_i32, %c0_i32_0 : i32, i32
  }
}

</mosaic_0001>

<llo_original>
// kernel: tpu_custom_call.1
$region0: #{tpu_custom_call.1}
  #allocation0 [shape = 'u32[]', space=smem, size = 0x4, offset = 0x4, fixed_abs, tag = 'smem constant byte address 0x4 - core index']
  #allocation1 [shape = 'u32[72,128]{1,0:T(1,128)}', space=vmem, size = 0x9000, scoped, tag = 'internal scratch']
  #allocation2 [shape = 'f32[2,32]{1,0:T(2,128)}', space=vmem, size = 0x400, scoped, tag = 'scratch operand']
  #allocation3 [shape = 'f32[1,1]{1,0:T(1,128)S(1)}', space=vmem, size = 0x200, scoped, tag = 'scoped memory for tpu_custom_call.1']
  %s0 = inlined_call_operand.vmem [shape: f32[2,20,32], index: 0, kind: input, shape index: {}]
  %s1 = inlined_call_operand.vmem [shape: f32[32,128], index: 1, kind: input, shape index: {}]
  %s2 = inlined_call_operand.vmem [shape: f32[1,128], index: 2, kind: input, shape index: {}]
  %s3 = inlined_call_operand.vmem [shape: f32[128,1], index: 3, kind: input, shape index: {}]
  %s4 = inlined_call_operand.<no memory space> [shape: f32[1,1], index: 4, kind: input, shape index: {}]
  %s5 = inlined_call_operand.hbm [shape: f32[2,32], index: 5, kind: output, shape index: {0}]
  %s6 = inlined_call_operand.vmem [shape: f32[2,1], index: 6, kind: output, shape index: {1}]
  %7 = xla_tuple %s5, %s6
  %s8 = sld [smem:[#allocation0]]
  $region107: #{tpu_custom_call.1} parent=0
    _
  %s10 = ssub.s32 1, %s8
  %s11 = scalar_select 0, %s10, %s8
  %v12 = vstv %s4
  %13 = vst [vmem:[#allocation3] sm:$0x1] %v12
  $region1: #{tpu_custom_call.1} parent=0
    #allocation4 [shape = 'u8[16384]{0}', space=vmem, size = 0x4000, scoped, tag = 'input window, operand 0']
    #allocation5 [shape = 'u8[1024]{0}', space=vmem, size = 0x400, scoped, tag = 'output window, operand 0, single buffered']
    #allocation6 [shape = 's32[2]{0}', space=sflag, size = 0x8, scoped, tag = 'scoped memory for tpu_custom_call.1']
    %14 = vsyncpa [#allocation6], 0
    loop: start=0, step=1, limit=5
    $region2: #{tpu_custom_call.1} parent=1 // loop_pre_header
      _
    $region3: #{tpu_custom_call.1} parent=1 // loop_header
      %s16 = sphi 0, %s20
      %p17 = scmp.ge.s32.totalorder %s16, 5
      %s26 = sphi 0, %s28
      %s29 = sphi 0, %s26
      %s30 = sphi 0, %s29
      %s46 = sphi 0, %s30
      %s50 = sphi 0, %s50
      %s52 = sphi 0, %s50
      %s53 = sphi 0, %s52
      %s67 = sphi 0, %s53
      %s71 = sphi 0, %s71
      %s73 = sphi 0, %s71
      %s74 = sphi 0, %s73
      %s88 = sphi 0, %s74
      %s92 = sphi 0, %s92
      %s94 = sphi 0, %s92
      %s95 = sphi 0, %s94
      %s109 = sphi 0, %s95
      %s113 = sphi 0, %s113
      %s115 = sphi 0, %s113
      %s116 = sphi 0, %s115
      %s130 = sphi 0, %s116
      %s134 = sphi 0, %s134
      %s136 = sphi 0, %s134
      %s137 = sphi 0, %s136
      %s151 = sphi 0, %s137
      %s155 = sphi 0, %s155
      %s157 = sphi 0, %s155
      %s158 = sphi 0, %s157
      %s172 = sphi 0, %s158
    $region4: #{tpu_custom_call.1} parent=1 // loop_header_branch
      %19 = sbr.rel (%p17) target = $region8
    $region5: #{tpu_custom_call.1} parent=1 // loop_body
      %s21 = ssub.s32 %s16, 1
      %s22 = ssub.s32 %s16, 2
      %s23 = sadd.s32 %s16, 1
      %s24 = ssub.s32 %s16, %s23
      %p25 = scmp.eq.s32.totalorder %s24, 0
      %s27 = sadd.s32 %s26, 1
      %s28 = scalar_select %p25, %s26, %s27
      %p31 = pneg %p25
      %p32 = scmp.eq.s32.totalorder %s16, 2
      %p33 = por %p31, %p32
      %p34 = scmp.ne.s32.totalorder %s26, %s29
      %p35 = scmp.eq.s32.totalorder %s16, 0
      %p36 = por %p34, %p35
      %p37 = scmp.ne.s32.totalorder %s26, %s29
      %p38 = scmp.eq.s32.totalorder %s21, 2
      %p39 = por %p37, %p38
      %p40 = scmp.ne.s32.totalorder %s29, %s30
      %p41 = scmp.eq.s32.totalorder %s21, 0
      %p42 = por %p40, %p41
      %p43 = scmp.ne.s32.totalorder %s29, %s30
      %p44 = scmp.eq.s32.totalorder %s22, 2
      %p45 = por %p43, %p44
      %p47 = scmp.ne.s32.totalorder %s30, %s46
      %p48 = scmp.eq.s32.totalorder %s22, 0
      %p49 = por %p47, %p48
      %s51 = sadd.s32 %s50, 1
      %p54 = scmp.eq.s32.totalorder %s16, 2
      %p55 = scmp.ne.s32.totalorder %s50, %s52
      %p56 = scmp.eq.s32.totalorder %s16, 0
      %p57 = por %p55, %p56
      %p58 = scmp.ne.s32.totalorder %s50, %s52
      %p59 = scmp.eq.s32.totalorder %s21, 2
      %p60 = por %p58, %p59
      %p61 = scmp.ne.s32.totalorder %s52, %s53
      %p62 = scmp.eq.s32.totalorder %s21, 0
      %p63 = por %p61, %p62
      %p64 = scmp.ne.s32.totalorder %s52, %s53
      %p65 = scmp.eq.s32.totalorder %s22, 2
      %p66 = por %p64, %p65
      %p68 = scmp.ne.s32.totalorder %s53, %s67
      %p69 = scmp.eq.s32.totalorder %s22, 0
      %p70 = por %p68, %p69
      %s72 = sadd.s32 %s71, 1
      %p75 = scmp.eq.s32.totalorder %s16, 2
      %p76 = scmp.ne.s32.totalorder %s71, %s73
      %p77 = scmp.eq.s32.totalorder %s16, 0
      %p78 = por %p76, %p77
      %p79 = scmp.ne.s32.totalorder %s71, %s73
      %p80 = scmp.eq.s32.totalorder %s21, 2
      %p81 = por %p79, %p80
      %p82 = scmp.ne.s32.totalorder %s73, %s74
      %p83 = scmp.eq.s32.totalorder %s21, 0
      %p84 = por %p82, %p83
      %p85 = scmp.ne.s32.totalorder %s73, %s74
      %p86 = scmp.eq.s32.totalorder %s22, 2
      %p87 = por %p85, %p86
      %p89 = scmp.ne.s32.totalorder %s74, %s88
      %p90 = scmp.eq.s32.totalorder %s22, 0
      %p91 = por %p89, %p90
      %s93 = sadd.s32 %s92, 1
      %p96 = scmp.eq.s32.totalorder %s16, 2
      %p97 = scmp.ne.s32.totalorder %s92, %s94
      %p98 = scmp.eq.s32.totalorder %s16, 0
      %p99 = por %p97, %p98
      %p100 = scmp.ne.s32.totalorder %s92, %s94
      %p101 = scmp.eq.s32.totalorder %s21, 2
      %p102 = por %p100, %p101
      %p103 = scmp.ne.s32.totalorder %s94, %s95
      %p104 = scmp.eq.s32.totalorder %s21, 0
      %p105 = por %p103, %p104
      %p106 = scmp.ne.s32.totalorder %s94, %s95
      %p107 = scmp.eq.s32.totalorder %s22, 2
      %p108 = por %p106, %p107
      %p110 = scmp.ne.s32.totalorder %s95, %s109
      %p111 = scmp.eq.s32.totalorder %s22, 0
      %p112 = por %p110, %p111
      %s114 = sadd.s32 %s113, 1
      %p117 = scmp.eq.s32.totalorder %s16, 2
      %p118 = scmp.ne.s32.totalorder %s113, %s115
      %p119 = scmp.eq.s32.totalorder %s16, 0
      %p120 = por %p118, %p119
      %p121 = scmp.ne.s32.totalorder %s113, %s115
      %p122 = scmp.eq.s32.totalorder %s21, 2
      %p123 = por %p121, %p122
      %p124 = scmp.ne.s32.totalorder %s115, %s116
      %p125 = scmp.eq.s32.totalorder %s21, 0
      %p126 = por %p124, %p125
      %p127 = scmp.ne.s32.totalorder %s115, %s116
      %p128 = scmp.eq.s32.totalorder %s22, 2
      %p129 = por %p127, %p128
      %p131 = scmp.ne.s32.totalorder %s116, %s130
      %p132 = scmp.eq.s32.totalorder %s22, 0
      %p133 = por %p131, %p132
      %s135 = sadd.s32 %s134, 1
      %p138 = scmp.eq.s32.totalorder %s16, 2
      %p139 = scmp.ne.s32.totalorder %s134, %s136
      %p140 = scmp.eq.s32.totalorder %s16, 0
      %p141 = por %p139, %p140
      %p142 = scmp.ne.s32.totalorder %s134, %s136
      %p143 = scmp.eq.s32.totalorder %s21, 2
      %p144 = por %p142, %p143
      %p145 = scmp.ne.s32.totalorder %s136, %s137
      %p146 = scmp.eq.s32.totalorder %s21, 0
      %p147 = por %p145, %p146
      %p148 = scmp.ne.s32.totalorder %s136, %s137
      %p149 = scmp.eq.s32.totalorder %s22, 2
      %p150 = por %p148, %p149
      %p152 = scmp.ne.s32.totalorder %s137, %s151
      %p153 = scmp.eq.s32.totalorder %s22, 0
      %p154 = por %p152, %p153
      %s156 = sadd.s32 %s155, 1
      %p159 = scmp.eq.s32.totalorder %s16, 2
      %p160 = scmp.ne.s32.totalorder %s155, %s157
      %p161 = scmp.eq.s32.totalorder %s16, 0
      %p162 = por %p160, %p161
      %p163 = scmp.ne.s32.totalorder %s155, %s157
      %p164 = scmp.eq.s32.totalorder %s21, 2
      %p165 = por %p163, %p164
      %p166 = scmp.ne.s32.totalorder %s157, %s158
      %p167 = scmp.eq.s32.totalorder %s21, 0
      %p168 = por %p166, %p167
      %p169 = scmp.ne.s32.totalorder %s157, %s158
      %p170 = scmp.eq.s32.totalorder %s22, 2
      %p171 = por %p169, %p170
      %p173 = scmp.ne.s32.totalorder %s158, %s172
      %p174 = scmp.eq.s32.totalorder %s22, 0
      %p175 = por %p173, %p174
      %p176 = scmp.le.s32.totalorder 1, %s16
      %p177 = scmp.lt.s32.totalorder %s16, 4
      %p178 = pnand %p176, %p177
      %p179 = pneg %p178
      // Predicated region
      $region9: #{tpu_custom_call.1} parent=5 // pred_check
        _
      $region10: #{tpu_custom_call.1} parent=5 // pred_check_branch
        %181 = sbr.rel (%p178) target = $region12
      $region11: #{tpu_custom_call.1} parent=5 // pred_region
        %s182 = ssub.s32 %s16, 1
        // Predicated region
        $region13: #{tpu_custom_call.1} parent=11 // pred_check
          %p183 = pneg %p63
        $region14: #{tpu_custom_call.1} parent=11 // pred_check_branch
          %185 = sbr.rel (%p183) target = $region16
        $region15: #{tpu_custom_call.1} parent=11 // pred_region
          _
        $region16: #{tpu_custom_call.1} parent=11 // pred_fallthru
          _
        // Predicated region
        $region17: #{tpu_custom_call.1} parent=11 // pred_check
          %p186 = pneg %p84
        $region18: #{tpu_custom_call.1} parent=11 // pred_check_branch
          %188 = sbr.rel (%p186) target = $region20
        $region19: #{tpu_custom_call.1} parent=11 // pred_region
          _
        $region20: #{tpu_custom_call.1} parent=11 // pred_fallthru
          _
        // Predicated region
        $region21: #{tpu_custom_call.1} parent=11 // pred_check
          %p189 = pneg %p105
        $region22: #{tpu_custom_call.1} parent=11 // pred_check_branch
          %191 = sbr.rel (%p189) target = $region24
        $region23: #{tpu_custom_call.1} parent=11 // pred_region
          _
        $region24: #{tpu_custom_call.1} parent=11 // pred_fallthru
          _
        // Predicated region
        $region25: #{tpu_custom_call.1} parent=11 // pred_check
          %p192 = pneg %p126
        $region26: #{tpu_custom_call.1} parent=11 // pred_check_branch
          %194 = sbr.rel (%p192) target = $region28
        $region27: #{tpu_custom_call.1} parent=11 // pred_region
          _
        $region28: #{tpu_custom_call.1} parent=11 // pred_fallthru
          _
      $region12: #{tpu_custom_call.1} parent=5 // pred_fallthru
        _
      %p195 = scmp.lt.s32.totalorder %s16, 3
      // Predicated region
      $region29: #{tpu_custom_call.1} parent=5 // pred_check
        %p196 = pneg %p195
      $region30: #{tpu_custom_call.1} parent=5 // pred_check_branch
        %198 = sbr.rel (%p196) target = $region32
      $region31: #{tpu_custom_call.1} parent=5 // pred_region
        // Predicated region
        $region33: #{tpu_custom_call.1} parent=31 // pred_check
          %p199 = pneg %p36
        $region34: #{tpu_custom_call.1} parent=31 // pred_check_branch
          %201 = sbr.rel (%p199) target = $region36
        $region35: #{tpu_custom_call.1} parent=31 // pred_region
          %s202 = sand.u32 %s26, 1
          %s203 = sand.u32 %s26, 1
          %s204 = smul.addr %s203, 16
          %s205 = scalar_lea.vmem [#allocation4], %s204
          %s206 = smul.addr %s16, 8
          %s207 = scalar_lea.vmem %s0, %s206
          // Predicated region
          $region37: #{tpu_custom_call.1} parent=35 // pred_check
            _
          $region38: #{tpu_custom_call.1} parent=35 // pred_check_branch
            %209 = sbr.rel (0) target = $region40
          $region39: #{tpu_custom_call.1} parent=35 // pred_region
            // Predicated region
            $region41: #{tpu_custom_call.1} parent=39 // pred_check
              _
            $region42: #{tpu_custom_call.1} parent=39 // pred_check_branch
              %211 = sbr.rel (0) target = $region44
            $region43: #{tpu_custom_call.1} parent=39 // pred_region
              // Predicated region
              $region56: #{tpu_custom_call.1} parent=43 // pred_check
                _
              $region57: #{tpu_custom_call.1} parent=43 // pred_check_branch
                %229 = sbr.rel (0) target = $region59
              $region58: #{tpu_custom_call.1} parent=43 // pred_region
                loop: start=0, step=1, limit=1
                $region60: #{tpu_custom_call.1} parent=58 // loop_pre_header
                  _
                $region61: #{tpu_custom_call.1} parent=58 // loop_header
                  %s231 = sphi 0, %s235
                  %p232 = scmp.ge.s32.totalorder %s231, 1
                  %s236 = sphi %s207, %s207
                  %s237 = sphi %s205, %s205
                $region62: #{tpu_custom_call.1} parent=58 // loop_header_branch
                  %234 = sbr.rel (%p232) target = $region66
                $region63: #{tpu_custom_call.1} parent=58 // loop_body
                  %v238 = vld [vmem:[%s236] sm:$0xff]
                  %239 = vst [vmem:[%s237] sm:$0xff] %v238
                  %v240 = vld [vmem:[%s236 + $0x18] sm:$0xff]
                  %241 = vst [vmem:[%s237 + $0x8] sm:$0xff] %v240
                $region64: #{tpu_custom_call.1} parent=58 // loop_footer
                  %s235 = sadd.s32 1, %s231
                $region65: #{tpu_custom_call.1} parent=58 // loop_footer_branch
                  %230 = sbr.rel target = $region61
                $region66: #{tpu_custom_call.1} parent=58 // loop_exit
                  _
              $region59: #{tpu_custom_call.1} parent=43 // pred_fallthru
                _
              // Predicated region
              $region67: #{tpu_custom_call.1} parent=43 // pred_check
                _
              $region68: #{tpu_custom_call.1} parent=43 // pred_check_branch
                %243 = sbr.rel target = $region70
              $region69: #{tpu_custom_call.1} parent=43 // pred_region
                _
              $region70: #{tpu_custom_call.1} parent=43 // pred_fallthru
                _
            $region44: #{tpu_custom_call.1} parent=39 // pred_fallthru
              _
            // Predicated region
            $region45: #{tpu_custom_call.1} parent=39 // pred_check
              _
            $region46: #{tpu_custom_call.1} parent=39 // pred_check_branch
              %213 = sbr.rel target = $region48
            $region47: #{tpu_custom_call.1} parent=39 // pred_region
              %s215 = ssub.s32 256, 1
              loop: start=0, step=1, limit=1
              $region49: #{tpu_custom_call.1} parent=47 // loop_pre_header
                _
              $region50: #{tpu_custom_call.1} parent=47 // loop_header
                %s217 = sphi 0, %s221
                %p218 = scmp.ge.s32.totalorder %s217, 1
                %s222 = sphi %s207, %s207
                %s223 = sphi %s205, %s205
              $region51: #{tpu_custom_call.1} parent=47 // loop_header_branch
                %220 = sbr.rel (%p218) target = $region55
              $region52: #{tpu_custom_call.1} parent=47 // loop_body
                %v224 = vld [vmem:[%s222] sm:%s215]
                %225 = vst [vmem:[%s223] sm:%s215] %v224
                %v226 = vld [vmem:[%s222 + $0x18] sm:%s215]
                %227 = vst [vmem:[%s223 + $0x8] sm:%s215] %v226
              $region53: #{tpu_custom_call.1} parent=47 // loop_footer
                %s221 = sadd.s32 1, %s217
              $region54: #{tpu_custom_call.1} parent=47 // loop_footer_branch
                %216 = sbr.rel target = $region50
              $region55: #{tpu_custom_call.1} parent=47 // loop_exit
                _
            $region48: #{tpu_custom_call.1} parent=39 // pred_fallthru
              _
          $region40: #{tpu_custom_call.1} parent=35 // pred_fallthru
            _
          %244 = vnop
        $region36: #{tpu_custom_call.1} parent=31 // pred_fallthru
          _
      $region32: #{tpu_custom_call.1} parent=5 // pred_fallthru
        _
      %p245 = scmp.le.s32.totalorder 1, %s16
      %p246 = scmp.lt.s32.totalorder %s16, 4
      %p247 = pnand %p245, %p246
      %p248 = pneg %p247
      // Predicated region
      $region71: #{tpu_custom_call.1} parent=5 // pred_check
        _
      $region72: #{tpu_custom_call.1} parent=5 // pred_check_branch
        %250 = sbr.rel (%p247) target = $region74
      $region73: #{tpu_custom_call.1} parent=5 // pred_region
        %s251 = ssub.s32 %s16, 1
        %s252 = sand.u32 %s29, 1
        %s253 = sand.u32 %s29, 1
        %s254 = smul.addr %s253, 16
        %s255 = scalar_lea.vmem [#allocation4], %s254
        // Predicated region
        $region75: #{tpu_custom_call.1} parent=73 // pred_check
          %p256 = pneg %p42
        $region76: #{tpu_custom_call.1} parent=73 // pred_check_branch
          %258 = sbr.rel (%p256) target = $region78
        $region77: #{tpu_custom_call.1} parent=73 // pred_region
          _
        $region78: #{tpu_custom_call.1} parent=73 // pred_fallthru
          _
        %s259 = sand.u32 %s29, 1
        %s260 = sand.u32 %s29, 1
        %s261 = smul.addr %s260, 16
        %s262 = scalar_lea.vmem [#allocation4], %s261
        %p263 = pneg %p42
        %p264 = pneg %p39
        %p265 = pneg %p63
        %p266 = pneg %p60
        %p267 = pneg %p84
        %p268 = pneg %p81
        %p269 = pneg %p105
        %p270 = pneg %p102
        %p271 = pneg %p126
        %p272 = pneg %p123
        %p273 = pneg %p147
        %p274 = pneg %p144
        %p275 = pneg %p168
        %p276 = pneg %p165
        %p277 = scmp.eq.s32.totalorder %s21, 0
        // Predicated region
        $region79: #{tpu_custom_call.1} parent=73 // pred_check
          %p278 = pneg %p277
        $region80: #{tpu_custom_call.1} parent=73 // pred_check_branch
          %280 = sbr.rel (%p278) target = $region82
        $region81: #{tpu_custom_call.1} parent=73 // pred_region
          %vm281 = vcmask 254976
          %282 = vst.msk [vmem:[#allocation2] sm:$0x3] %vm281, 0.0
        $region82: #{tpu_custom_call.1} parent=73 // pred_fallthru
          _
        %v283 = vld [vmem:[%s255] sm:$0xff]
        %v284 = vld [vmem:[%s255 + $0x8] sm:$0xff]
        %s285 = smul.u32 %s21, 8
        %v286 = vlaneseq
        %v287 = vshrl.u32 %v286, 7
        %v288 = vstv %s285
        %v289 = vadd.s32 %v288, %v287
        %vm290 = vcmp.lt.s32.totalorder %v289, 20
        %v291 = vsel %vm290, 1, 0
        %vm292 = vcmp.eq.s32.totalorder %v291, 1
        %v293 = vsel %vm292, %v283, 0.0
        %v294 = vsel %vm292, %v284, 0.0
        %v295 = vld [vmem:[#allocation2] sm:$0x3]
        %vm296 = vcmask 261120
        %v297 = vsel %vm296, %v293, 0.0
        %v298 = vrot.slane %v297, 4
        %v299 = vadd.f32 %v297, %v298
        %v300 = vrot.slane %v299, 2
        %v301 = vadd.f32 %v299, %v300
        %v302 = vrot.slane %v301, 1
        %v303 = vadd.f32 %v301, %v302
        %v304 = vsel %vm296, %v294, 0.0
        %v305 = vrot.slane %v304, 4
        %v306 = vadd.f32 %v304, %v305
        %v307 = vrot.slane %v306, 2
        %v308 = vadd.f32 %v306, %v307
        %v309 = vrot.slane %v308, 1
        %v310 = vadd.f32 %v308, %v309
        %vm313 = vcmask 1041409
        %v314 = vsel %vm313, %v310, %v303
        %v316 = vadd.f32 %v295, %v314
        %vm317 = vcmask 254976
        %318 = vst.msk [vmem:[#allocation2] sm:$0x3] %vm317, %v316
        %p319 = scmp.eq.s32.totalorder %s21, 2
        // Predicated region
        $region83: #{tpu_custom_call.1} parent=73 // pred_check
          %p320 = pneg %p319
        $region84: #{tpu_custom_call.1} parent=73 // pred_check_branch
          %322 = sbr.rel (%p320) target = $region86
        $region85: #{tpu_custom_call.1} parent=73 // pred_region
          %v323 = vld [vmem:[#allocation2] sm:$0x3]
          %v324 = vmul.f32 %v323, 0.05
          %325 = vst.msk [vmem:[#allocation5] sm:$0x3] %vm317, %v324
          %v326 = vld [vmem:[%s1] sm:$0xff]
          %v327 = vld [vmem:[%s1 + $0x8] sm:$0xff]
          %v328 = vld [vmem:[%s1 + $0x10] sm:$0xff]
          %v329 = vld [vmem:[%s1 + $0x18] sm:$0xff]
          %v330 = vld [vmem:[%s2] sm:$0x1]
          %v332 = vperm.slane %v330, 0
          %v335 = vsel %vm296, %v324, 0
          %337 = vmatpush.msra.mxu0 0.0
          %338 = vmatpush.msra.mxu0 0.0
          %339 = vmatpush.msra.mxu0 0.0
          %340 = vmatpush.msra.mxu0 0.0
          %341 = vmatpush.msra.mxu0 0.0
          %342 = vmatpush.msra.mxu0 0.0
          %343 = vmatpush.msra.mxu0 0.0
          %344 = vmatpush.msra.mxu0 0.0
          %345 = vmatpush.msra.mxu0 0.0
          %346 = vmatpush.msra.mxu0 0.0
          %347 = vmatpush.msra.mxu0 0.0
          %348 = vmatpush.msra.mxu0 0.0
          %349 = vmatpush.msra.mxu0 %v329
          %350 = vmatpush.msra.mxu0 %v328
          %351 = vmatpush.msra.mxu0 %v327
          %352 = vmatpush.msra.mxu0 %v326
          %353 = vmatmul.f32.gmra.mxu0 %v335
          %v354 = vpop.f32.mrf.mxu0
          %v355 = vadd.f32 %v332, %v354
          %356 = vdwg.mxu0
          %v357 = vmax.f32 %v355, 0.0
          %v358 = vld [vmem:[%s3] sm:$0xff]
          %v359 = vld [vmem:[%s3 + $0x8] sm:$0xff]
          %v360 = vld [vmem:[%s3 + $0x10] sm:$0xff]
          %v361 = vld [vmem:[%s3 + $0x18] sm:$0xff]
          %v362 = vld [vmem:[%s3 + $0x20] sm:$0xff]
          %v363 = vld [vmem:[%s3 + $0x28] sm:$0xff]
          %v364 = vld [vmem:[%s3 + $0x30] sm:$0xff]
          %v365 = vld [vmem:[%s3 + $0x38] sm:$0xff]
          %v366 = vld [vmem:[%s3 + $0x40] sm:$0xff]
          %v367 = vld [vmem:[%s3 + $0x48] sm:$0xff]
          %v368 = vld [vmem:[%s3 + $0x50] sm:$0xff]
          %v369 = vld [vmem:[%s3 + $0x58] sm:$0xff]
          %v370 = vld [vmem:[%s3 + $0x60] sm:$0xff]
          %v371 = vld [vmem:[%s3 + $0x68] sm:$0xff]
          %v372 = vld [vmem:[%s3 + $0x70] sm:$0xff]
          %v373 = vld [vmem:[%s3 + $0x78] sm:$0xff]
          %v374 = vld [vmem:[#allocation3] sm:$0x1]
          %v376 = vperm.slane %v374, 0
          %378 = vmatpush.msra.mxu0 %v373
          %379 = vmatpush.msra.mxu0 %v372
          %380 = vmatpush.msra.mxu0 %v371
          %381 = vmatpush.msra.mxu0 %v370
          %382 = vmatpush.msra.mxu0 %v369
          %383 = vmatpush.msra.mxu0 %v368
          %384 = vmatpush.msra.mxu0 %v367
          %385 = vmatpush.msra.mxu0 %v366
          %386 = vmatpush.msra.mxu0 %v365
          %387 = vmatpush.msra.mxu0 %v364
          %388 = vmatpush.msra.mxu0 %v363
          %389 = vmatpush.msra.mxu0 %v362
          %390 = vmatpush.msra.mxu0 %v361
          %391 = vmatpush.msra.mxu0 %v360
          %392 = vmatpush.msra.mxu0 %v359
          %393 = vmatpush.msra.mxu0 %v358
          %394 = vmatmul.f32.gmra.mxu0 %v357
          %v395 = vpop.f32.mrf.mxu0
          %v396 = vadd.f32 %v376, %v395
          %397 = vdwg.mxu0
          %v398 = vxor.u32 %v396, 2147483648
          %v399 = vmul.f32 %v398, 1.442695
          %v400 = vpow.pop %v399
          %v401 = vadd.f32 %v400, 1.0
          %v402 = vrcp.pop %v401
          %v403 = vmul.f32 %v401, %v402
          %v404 = vsub.f32 1.0, %v403
          %v405 = vmul.f32 %v402, %v404
          %v406 = vadd.f32 %v402, %v405
          %vm407 = vweird.f32 %v401
          %vm408 = vweird.f32 %v402
          %vm409 = vmor %vm407, %vm408
          %v410 = vsel %vm409, %v402, %v406
          %v411 = vand.u32 2147483647, %v401
          %vm412 = vcmp.eq.f32.partialorder %v411, 8.507059e+37
          %v413 = vand.u32 %v401, 2147483648
          %v414 = vor.u32 1.1754944e-38, %v413
          %v415 = vsel %vm412, %v414, %v410
          %v416 = vmul.f32 1.0, %v415
          %vm417 = vcmask 1024
          %418 = vst.msk [vmem:[%s6] sm:$0x3] %vm417, %v416
        $region86: #{tpu_custom_call.1} parent=73 // pred_fallthru
          _
        // Predicated region
        $region87: #{tpu_custom_call.1} parent=73 // pred_check
          %p419 = pneg %p144
        $region88: #{tpu_custom_call.1} parent=73 // pred_check_branch
          %421 = sbr.rel (%p419) target = $region90
        $region89: #{tpu_custom_call.1} parent=73 // pred_region
          %423 = vsyncadd [#allocation6], 0
          %s425 = sshll.u32 [#allocation5], 4
          %s426 = int_to_ptr.vmem [resolvable:$true] %s425
          %s427 = sshll.u32 %s5, 4
          %s428 = int_to_ptr.hbm [resolvable:$true] %s427
          %430 = dma.vmem_to_hbm [thread:$0]  %s426, 32, %s428, [#allocation6]
        $region90: #{tpu_custom_call.1} parent=73 // pred_fallthru
          _
        // Predicated region
        $region91: #{tpu_custom_call.1} parent=73 // pred_check
          %p431 = pneg %p165
        $region92: #{tpu_custom_call.1} parent=73 // pred_check_branch
          %433 = sbr.rel (%p431) target = $region94
        $region93: #{tpu_custom_call.1} parent=73 // pred_region
          _
        $region94: #{tpu_custom_call.1} parent=73 // pred_fallthru
          _
        // Predicated region
        $region95: #{tpu_custom_call.1} parent=73 // pred_check
          %p434 = pneg %p144
        $region96: #{tpu_custom_call.1} parent=73 // pred_check_branch
          %436 = sbr.rel (%p434) target = $region98
        $region97: #{tpu_custom_call.1} parent=73 // pred_region
          %438 = dma.done [#allocation6], 32
        $region98: #{tpu_custom_call.1} parent=73 // pred_fallthru
          _
        // Predicated region
        $region99: #{tpu_custom_call.1} parent=73 // pred_check
          %p439 = pneg %p165
        $region100: #{tpu_custom_call.1} parent=73 // pred_check_branch
          %441 = sbr.rel (%p439) target = $region102
        $region101: #{tpu_custom_call.1} parent=73 // pred_region
          _
        $region102: #{tpu_custom_call.1} parent=73 // pred_fallthru
          _
      $region74: #{tpu_custom_call.1} parent=5 // pred_fallthru
        _
      %p442 = scmp.le.s32.totalorder 2, %s16
      // Predicated region
      $region103: #{tpu_custom_call.1} parent=5 // pred_check
        %p443 = pneg %p442
      $region104: #{tpu_custom_call.1} parent=5 // pred_check_branch
        %445 = sbr.rel (%p443) target = $region106
      $region105: #{tpu_custom_call.1} parent=5 // pred_region
        %s446 = ssub.s32 %s16, 2
      $region106: #{tpu_custom_call.1} parent=5 // pred_fallthru
        _
    $region6: #{tpu_custom_call.1} parent=1 // loop_footer
      %s20 = sadd.s32 1, %s16
    $region7: #{tpu_custom_call.1} parent=1 // loop_footer_branch
      %15 = sbr.rel target = $region3
    $region8: #{tpu_custom_call.1} parent=1 // loop_exit
      _
    %447 = vsyncpa [#allocation6], 1
    %s448 = scalar_lea.sflag [#allocation6], 1
    %449 = vsyncpa %s448, 1

</llo_original>
